<compile_context>
chip_gen: v7x
topology: tpu7x:2x2x1
jax: 0.10.0
libtpu: 0.0.40
codegen_flags: <defaults>
</compile_context>

<pallas_src>
import functools

import jax
import jax.numpy as jnp
from jax.experimental import pallas as pl
from jax.experimental.pallas import tpu as pltpu

_LANES = 128
_MAX_BR = 2048  # 2048x128 f32 = 1 MiB/buffer; 2 inputs x 2 buffers = 4 MiB (v5e-safe)


def _focal_kernel(pred_ref, true_ref, fsum_ref, csum_ref, *, n, br, ignore_value, gamma):
    """Per-block partial focal-loss sum and valid-count, emitted as (8,128) slabs."""
    i = pl.program_id(0)

    yp = pred_ref[...].astype(jnp.float32)   # original predictions (logits per caller)
    yt = true_ref[...].astype(jnp.float32)   # original targets

    # Validity mask: real (non-padded, in-bounds) element AND target != ignore_value.
    row = jax.lax.broadcasted_iota(jnp.int32, (br, _LANES), 0)
    lane = jax.lax.broadcasted_iota(jnp.int32, (br, _LANES), 1)
    flat = (i * br + row) * _LANES + lane
    valid = (flat < n) & (yt != ignore_value)

    # Reproduce the module's argument swap: BCEWithLogits(input=targets, target=preds).
    x = yt   # "logits" argument of BCEWithLogits
    z = yp   # "target" argument of BCEWithLogits

    # Numerically-stable BCE-with-logits:  loss = max(x,0) - x*z + log1p(exp(-|x|))
    e = jnp.exp(-jnp.abs(x))
    m = jnp.maximum(x, 0.0)
    cent = m - x * z + jnp.log1p(e)

    # pt = exp(-cent) = exp(x*z - m) / (1 + e); reuse e, approx reciprocal on the EUP.
    pt = jnp.exp(x * z - m) * pl.reciprocal(1.0 + e, approx=True)

    q = 1.0 - pt
    g = float(gamma)
    if g.is_integer() and g >= 1.0:
        qg = q
        for _ in range(int(g) - 1):   # gamma==2 -> a single extra multiply (VPU)
            qg = qg * q
    else:
        # TODO(synk): non-integer gamma falls back to pow (log+exp on the EUP).
        qg = q ** g

    focal = jnp.where(valid, qg * cent, 0.0)
    cnt = valid.astype(jnp.float32)

    # Sublane-aligned partial reduction (pure VPU adds, no per-step XLU/SMEM chain).
    fsum_ref[0] = jnp.sum(focal.reshape(br // 8, 8, _LANES), axis=0)
    csum_ref[0] = jnp.sum(cnt.reshape(br // 8, 8, _LANES), axis=0)


def focal_loss(y_pred, y_true, *, ignore_value=-1.0, gamma=2.0, reduction="mean"):
    """Pallas TPU implementation of FocalLoss.forward (binary, from_logits=True)."""
    n = 1
    for d in y_pred.shape:
        n *= int(d)

    yp = y_pred.reshape(-1)
    yt = y_true.reshape(-1)

    # Pad only if the flat length is not lane-aligned (<=127 elements); padded tail is
    # masked in-kernel via the flat-index-vs-n test, so the pad value is irrelevant.
    rem = n % _LANES
    if rem:
        pad = _LANES - rem
        yp = jnp.pad(yp, (0, pad))
        yt = jnp.pad(yt, (0, pad))

    rows = yp.shape[0] // _LANES
    yp2 = yp.reshape(rows, _LANES)
    yt2 = yt.reshape(rows, _LANES)

    br = min(_MAX_BR, ((rows + 7) // 8) * 8)   # block sublane count, multiple of 8
    num_blocks = pl.cdiv(rows, br)

    f_part, c_part = pl.pallas_call(
        functools.partial(_focal_kernel, n=n, br=br,
                          ignore_value=float(ignore_value), gamma=gamma),
        out_shape=(
            jax.ShapeDtypeStruct((num_blocks, 8, _LANES), jnp.float32),
            jax.ShapeDtypeStruct((num_blocks, 8, _LANES), jnp.float32),
        ),
        grid=(num_blocks,),
        in_specs=[
            pl.BlockSpec((br, _LANES), lambda i: (i, 0)),
            pl.BlockSpec((br, _LANES), lambda i: (i, 0)),
        ],
        out_specs=(
            pl.BlockSpec((1, 8, _LANES), lambda i: (i, 0, 0)),
            pl.BlockSpec((1, 8, _LANES), lambda i: (i, 0, 0)),
        ),
        compiler_params=pltpu.CompilerParams(
            dimension_semantics=("parallel",)),   # race-free partials -> 2-TC on v7x
    )(yp2, yt2)

    total = jnp.sum(f_part)
    count = jnp.sum(c_part)

    if reduction == "mean":
        # If every element is ignored, count == 0 and this yields NaN, matching
        # torch.mean over an empty tensor.
        return total / count
    elif reduction == "sum":
        return total
    else:
        # TODO(synk): reduction='None' returns a dynamically-sized per-element vector
        # (after boolean filtering) in PyTorch, not expressible with static shapes.
        raise NotImplementedError("reduction='None' is not supported by this kernel")


def _reference_focal_loss(y_pred, y_true, ignore_value=-1.0, gamma=2.0):
    """Pure-JAX reference mirroring the PyTorch module (incl. the argument swap)."""
    yp = y_pred.reshape(-1).astype(jnp.float32)
    yt = y_true.reshape(-1).astype(jnp.float32)
    valid = yt != ignore_value
    x, z = yt, yp
    cent = jnp.maximum(x, 0.0) - x * z + jnp.log1p(jnp.exp(-jnp.abs(x)))
    pt = jnp.exp(-cent)
    focal = (1.0 - pt) ** gamma * cent
    focal = jnp.where(valid, focal, 0.0)
    return jnp.sum(focal) / jnp.sum(valid.astype(jnp.float32))


if __name__ == "__main__":
    key = jax.random.PRNGKey(0)
    k1, k2, k3 = jax.random.split(key, 3)

    B, C, H, W = 2, 4, 16, 16
    # Predictions: logits.
    y_pred = jax.random.normal(k1, (B, C, H, W), dtype=jnp.float32)
    # Targets: binary {0,1} with ~10% of entries set to the ignore value (-1).
    y_true = jax.random.bernoulli(k2, 0.5, (B, C, H, W)).astype(jnp.float32)
    ignore_mask = jax.random.bernoulli(k3, 0.1, (B, C, H, W))
    y_true = jnp.where(ignore_mask, -1.0, y_true)

    loss = focal_loss(y_pred, y_true, ignore_value=-1.0, gamma=2.0, reduction="mean")
    loss = jax.block_until_ready(loss)

    ref = _reference_focal_loss(y_pred, y_true)
    # Tolerance accounts for the approximate EUP reciprocal used for pt in the kernel.
    assert jnp.allclose(loss, ref, rtol=5e-3, atol=1e-6), (loss, ref)

    print("KERNEL_OK")
</pallas_src>

<mosaic_0001>
module attributes {stable_mosaic.version = 11 : i64} {
  func.func @_focal_kernel(%arg0: i32, %arg1: memref<16x128xf32, #tpu.memory_space<vmem>>, %arg2: memref<16x128xf32, #tpu.memory_space<vmem>>, %arg3: memref<1x8x128xf32, #tpu.memory_space<vmem>>, %arg4: memref<1x8x128xf32, #tpu.memory_space<vmem>>) attributes {dimension_semantics = [#tpu.dimension_semantics<parallel>], iteration_bounds = array<i64: 1>, scalar_prefetch = 0 : i64, scratch_operands = 0 : i64, tpu.core_type = #tpu.core_type<tc>, window_params = [{transform_indices = @transform_0, window_bounds = array<i64: 16, 128>}, {transform_indices = @transform_1, window_bounds = array<i64: 16, 128>}, {transform_indices = @transform_2, window_bounds = array<i64: 1, 8, 128>}, {transform_indices = @transform_3, window_bounds = array<i64: 1, 8, 128>}]} {
    %c0 = arith.constant 0 : index
    %c0_0 = arith.constant 0 : index
    %0 = vector.load %arg1[%c0, %c0_0] : memref<16x128xf32, #tpu.memory_space<vmem>>, vector<16x128xf32>
    %c0_1 = arith.constant 0 : index
    %c0_2 = arith.constant 0 : index
    %1 = vector.load %arg2[%c0_1, %c0_2] : memref<16x128xf32, #tpu.memory_space<vmem>>, vector<16x128xf32>
    %2 = tpu.iota {dimensions = array<i32: 0>} : vector<16x128xi32>
    %3 = tpu.iota {dimensions = array<i32: 1>} : vector<16x128xi32>
    %c16_i32 = arith.constant 16 : i32
    %4 = arith.muli %arg0, %c16_i32 : i32
    %5 = vector.broadcast %4 : i32 to vector<16x128xi32>
    %6 = arith.addi %5, %2 : vector<16x128xi32>
    %c128_i32 = arith.constant 128 : i32
    %7 = vector.broadcast %c128_i32 : i32 to vector<16x128xi32>
    %8 = arith.muli %6, %7 : vector<16x128xi32>
    %9 = arith.addi %8, %3 : vector<16x128xi32>
    %c2048_i32 = arith.constant 2048 : i32
    %10 = vector.broadcast %c2048_i32 : i32 to vector<16x128xi32>
    %11 = arith.cmpi slt, %9, %10 : vector<16x128xi32>
    %cst = arith.constant -1.000000e+00 : f32
    %12 = vector.broadcast %cst : f32 to vector<16x128xf32>
    %13 = arith.cmpf one, %1, %12 : vector<16x128xf32>
    %14 = arith.andi %11, %13 : vector<16x128xi1>
    %15 = math.absf %1 : vector<16x128xf32>
    %cst_3 = arith.constant 0.000000e+00 : f32
    %16 = vector.broadcast %cst_3 : f32 to vector<16x128xf32>
    %17 = arith.subf %16, %15 : vector<16x128xf32>
    %18 = math.exp %17 : vector<16x128xf32>
    %cst_4 = arith.constant 0.000000e+00 : f32
    %19 = vector.broadcast %cst_4 : f32 to vector<16x128xf32>
    %20 = arith.maximumf %1, %19 : vector<16x128xf32>
    %21 = arith.mulf %1, %0 : vector<16x128xf32>
    %22 = arith.subf %20, %21 : vector<16x128xf32>
    %23 = math.log1p %18 : vector<16x128xf32>
    %24 = arith.addf %22, %23 : vector<16x128xf32>
    %25 = arith.mulf %1, %0 : vector<16x128xf32>
    %26 = arith.subf %25, %20 : vector<16x128xf32>
    %27 = math.exp %26 : vector<16x128xf32>
    %cst_5 = arith.constant 1.000000e+00 : f32
    %28 = vector.broadcast %cst_5 : f32 to vector<16x128xf32>
    %29 = arith.addf %28, %18 : vector<16x128xf32>
    %30 = tpu.reciprocal %29 {approx = true} : vector<16x128xf32> -> vector<16x128xf32>
    %31 = arith.mulf %27, %30 : vector<16x128xf32>
    %cst_6 = arith.constant 1.000000e+00 : f32
    %32 = vector.broadcast %cst_6 : f32 to vector<16x128xf32>
    %33 = arith.subf %32, %31 : vector<16x128xf32>
    %34 = arith.mulf %33, %33 : vector<16x128xf32>
    %35 = arith.mulf %34, %24 : vector<16x128xf32>
    %cst_7 = arith.constant 0.000000e+00 : f32
    %36 = vector.broadcast %cst_7 : f32 to vector<16x128xf32>
    %37 = arith.select %14, %35, %36 : vector<16x128xi1>, vector<16x128xf32>
    %38 = arith.extui %14 : vector<16x128xi1> to vector<16x128xi32>
    %39 = arith.sitofp %38 : vector<16x128xi32> to vector<16x128xf32>
    %40 = vector.shape_cast %37 : vector<16x128xf32> to vector<2x8x128xf32>
    %cst_8 = arith.constant dense<0.000000e+00> : vector<8x128xf32>
    %41 = vector.multi_reduction <add>, %40, %cst_8 [0] : vector<2x8x128xf32> to vector<8x128xf32>
    %c0_9 = arith.constant 0 : index
    %c0_10 = arith.constant 0 : index
    %c0_11 = arith.constant 0 : index
    %42 = vector.load %arg3[%c0_9, %c0_10, %c0_11] : memref<1x8x128xf32, #tpu.memory_space<vmem>>, vector<1x8x128xf32>
    %43 = vector.shape_cast %42 : vector<1x8x128xf32> to vector<8x128xf32>
    %44 = vector.shape_cast %41 : vector<8x128xf32> to vector<1x8x128xf32>
    tpu.vector_store %arg3[%c0_9, %c0_10, %c0_11], %44 {strides = array<i32>} : memref<1x8x128xf32, #tpu.memory_space<vmem>>, vector<1x8x128xf32>,
    %45 = vector.shape_cast %39 : vector<16x128xf32> to vector<2x8x128xf32>
    %cst_12 = arith.constant dense<0.000000e+00> : vector<8x128xf32>
    %46 = vector.multi_reduction <add>, %45, %cst_12 [0] : vector<2x8x128xf32> to vector<8x128xf32>
    %c0_13 = arith.constant 0 : index
    %c0_14 = arith.constant 0 : index
    %c0_15 = arith.constant 0 : index
    %47 = vector.load %arg4[%c0_13, %c0_14, %c0_15] : memref<1x8x128xf32, #tpu.memory_space<vmem>>, vector<1x8x128xf32>
    %48 = vector.shape_cast %47 : vector<1x8x128xf32> to vector<8x128xf32>
    %49 = vector.shape_cast %46 : vector<8x128xf32> to vector<1x8x128xf32>
    tpu.vector_store %arg4[%c0_13, %c0_14, %c0_15], %49 {strides = array<i32>} : memref<1x8x128xf32, #tpu.memory_space<vmem>>, vector<1x8x128xf32>,
    return
  }
  func.func @transform_0(%arg0: i32) -> (i32, i32) {
    %c0_i32 = arith.constant 0 : i32
    %c0_i32_0 = arith.constant 0 : i32
    return %arg0, %c0_i32 : i32, i32
  }
  func.func @transform_1(%arg0: i32) -> (i32, i32) {
    %c0_i32 = arith.constant 0 : i32
    %c0_i32_0 = arith.constant 0 : i32
    return %arg0, %c0_i32 : i32, i32
  }
  func.func @transform_2(%arg0: i32) -> (i32, i32, i32) {
    %c0_i32 = arith.constant 0 : i32
    %c0_i32_0 = arith.constant 0 : i32
    %c0_i32_1 = arith.constant 0 : i32
    return %arg0, %c0_i32, %c0_i32_0 : i32, i32, i32
  }
  func.func @transform_3(%arg0: i32) -> (i32, i32, i32) {
    %c0_i32 = arith.constant 0 : i32
    %c0_i32_0 = arith.constant 0 : i32
    %c0_i32_1 = arith.constant 0 : i32
    return %arg0, %c0_i32, %c0_i32_0 : i32, i32, i32
  }
}

</mosaic_0001>

<llo_original>
// kernel: tpu_custom_call.1
$region0: #{tpu_custom_call.1}
  #allocation0 [shape = 'u32[]', space=smem, size = 0x4, offset = 0x4, fixed_abs, tag = 'smem constant byte address 0x4 - core index']
  #allocation1 [shape = 'u32[144,128]{1,0:T(1,128)}', space=vmem, size = 0x12000, scoped, tag = 'internal scratch']
  %s0 = inlined_call_operand.hbm [shape: f32[16,128], index: 0, kind: input, shape index: {}]
  %s1 = inlined_call_operand.hbm [shape: f32[16,128], index: 1, kind: input, shape index: {}]
  %s2 = inlined_call_operand.hbm [shape: f32[1,8,128], index: 2, kind: output, shape index: {0}]
  %s3 = inlined_call_operand.hbm [shape: f32[1,8,128], index: 3, kind: output, shape index: {1}]
  %4 = xla_tuple %s2, %s3
  %s5 = sld [smem:[#allocation0]]
  $region34: #{tpu_custom_call.1} parent=0
    _
  %s7 = ssub.s32 1, %s5
  %s8 = scalar_select 0, %s7, %s5
  $region1: #{tpu_custom_call.1} parent=0
    #allocation2 [shape = 'u8[8192]{0}', space=vmem, size = 0x2000, scoped, tag = 'input window, operand 0, single buffered']
    #allocation3 [shape = 's32[1]{0}', space=sflag, size = 0x4, scoped, tag = 'scoped memory for tpu_custom_call.1']
    #allocation4 [shape = 's32[1]{0}', space=sflag, size = 0x4, scoped, tag = 'scoped memory for tpu_custom_call.1']
    #allocation5 [shape = 'u8[8192]{0}', space=vmem, size = 0x2000, scoped, tag = 'input window, operand 1, single buffered']
    #allocation6 [shape = 's32[1]{0}', space=sflag, size = 0x4, scoped, tag = 'scoped memory for tpu_custom_call.1']
    #allocation7 [shape = 'u8[4096]{0}', space=vmem, size = 0x1000, scoped, tag = 'output window, operand 0, single buffered']
    #allocation8 [shape = 'u8[4096]{0}', space=vmem, size = 0x1000, scoped, tag = 'output window, operand 1, single buffered']
    #allocation9 [shape = 's32[1]{0}', space=sflag, size = 0x4, scoped, tag = 'scoped memory for tpu_custom_call.1']
    %9 = vsyncpa [#allocation3], 0
    %10 = vsyncpa [#allocation6], 0
    %11 = vsyncpa [#allocation4], 0
    %12 = vsyncpa [#allocation9], 0
    // Predicated region
    $region2: #{tpu_custom_call.1} parent=1 // pred_check
      _
    $region3: #{tpu_custom_call.1} parent=1 // pred_check_branch
      %14 = sbr.rel (0) target = $region5
    $region4: #{tpu_custom_call.1} parent=1 // pred_region
      %s16 = ssub.s32 256, 256
      %17 = vsyncadd [#allocation3], %s16
      %s18 = sshll.u32 [#allocation2], 4
      %s19 = int_to_ptr.vmem [resolvable:$true] %s18
      %24 = dma.hbm_to_vmem [thread:$0]  %s0, 256, %s19, [#allocation3], 128, 128, 8
    $region5: #{tpu_custom_call.1} parent=1 // pred_fallthru
      _
    // Predicated region
    $region6: #{tpu_custom_call.1} parent=1 // pred_check
      _
    $region7: #{tpu_custom_call.1} parent=1 // pred_check_branch
      %26 = sbr.rel (0) target = $region9
    $region8: #{tpu_custom_call.1} parent=1 // pred_region
      %s28 = ssub.s32 256, 256
      %29 = vsyncadd [#allocation6], %s28
      %s30 = sshll.u32 [#allocation5], 4
      %s31 = int_to_ptr.vmem [resolvable:$true] %s30
      %36 = dma.hbm_to_vmem [thread:$0]  %s1, 256, %s31, [#allocation6], 128, 128, 8
    $region9: #{tpu_custom_call.1} parent=1 // pred_fallthru
      _
    // Predicated region
    $region10: #{tpu_custom_call.1} parent=1 // pred_check
      _
    $region11: #{tpu_custom_call.1} parent=1 // pred_check_branch
      %38 = sbr.rel (0) target = $region13
    $region12: #{tpu_custom_call.1} parent=1 // pred_region
      %39 = dma.done [#allocation3], 256
    $region13: #{tpu_custom_call.1} parent=1 // pred_fallthru
      _
    // Predicated region
    $region14: #{tpu_custom_call.1} parent=1 // pred_check
      _
    $region15: #{tpu_custom_call.1} parent=1 // pred_check_branch
      %41 = sbr.rel (0) target = $region17
    $region16: #{tpu_custom_call.1} parent=1 // pred_region
      %42 = dma.done [#allocation6], 256
    $region17: #{tpu_custom_call.1} parent=1 // pred_fallthru
      _
    %v43 = vld [vmem:[#allocation2] sm:$0xff]
    %v44 = vld [vmem:[#allocation2 + $0x8] sm:$0xff]
    %v45 = vld [vmem:[#allocation5] sm:$0xff]
    %v46 = vld [vmem:[#allocation5 + $0x8] sm:$0xff]
    %v47 = vlaneseq
    %v48 = vshrl.u32 %v47, 7
    %v49 = vadd.s32 %v48, 8
    %v50 = vlaneseq
    %v51 = vand.u32 %v50, 127
    %s52 = smul.u32 0, 16
    %v53 = vstv %s52
    %v54 = vadd.s32 %v53, %v48
    %v55 = vadd.s32 %v53, %v49
    %v56 = vmul.u32 %v54, 128
    %v57 = vmul.u32 %v55, 128
    %v58 = vadd.s32 %v56, %v51
    %v59 = vadd.s32 %v57, %v51
    %vm60 = vcmp.lt.s32.totalorder %v58, 2048
    %vm61 = vcmp.lt.s32.totalorder %v59, 2048
    %vm62 = vcmp.ne.f32.partialorder %v45, -1.0
    %vm63 = vcmp.ne.f32.partialorder %v46, -1.0
    %vm64 = vmand %vm60, %vm62
    %vm65 = vmand %vm61, %vm63
    %v66 = vand.u32 2147483647, %v45
    %v67 = vand.u32 2147483647, %v46
    %v68 = vsub.f32 0.0, %v66
    %v69 = vsub.f32 0.0, %v67
    %v70 = vmul.f32 %v68, 1.442695
    %v71 = vpow.pop %v70
    %v72 = vmul.f32 %v69, 1.442695
    %v73 = vpow.pop %v72
    %v74 = vmax.f32 %v45, 0.0
    %v75 = vmax.f32 %v46, 0.0
    %v76 = vmul.f32 %v45, %v43
    %v77 = vmul.f32 %v46, %v44
    %v78 = vsub.f32 %v74, %v76
    %v79 = vsub.f32 %v75, %v77
    %v80 = vadd.f32 %v71, 1.0
    %v81 = vlog2.pop %v80
    %v82 = vmul.f32 %v81, 0.6931472
    %v83 = vmul.f32 -0.5, %v71
    %v84 = vadd.f32 %v83, 1.0
    %v85 = vmul.f32 %v84, %v71
    %v86 = vand.u32 2147483647, %v71
    %vm87 = vcmp.lt.f32.partialorder %v86, 0.0004427343
    %v88 = vsel %vm87, %v85, %v82
    %v89 = vadd.f32 %v73, 1.0
    %v90 = vlog2.pop %v89
    %v91 = vmul.f32 %v90, 0.6931472
    %v92 = vmul.f32 -0.5, %v73
    %v93 = vadd.f32 %v92, 1.0
    %v94 = vmul.f32 %v93, %v73
    %v95 = vand.u32 2147483647, %v73
    %vm96 = vcmp.lt.f32.partialorder %v95, 0.0004427343
    %v97 = vsel %vm96, %v94, %v91
    %v98 = vadd.f32 %v78, %v88
    %v99 = vadd.f32 %v79, %v97
    %v100 = vsub.f32 %v76, %v74
    %v101 = vsub.f32 %v77, %v75
    %v102 = vmul.f32 %v100, 1.442695
    %v103 = vpow.pop %v102
    %v104 = vmul.f32 %v101, 1.442695
    %v105 = vpow.pop %v104
    %v106 = vadd.f32 %v71, 1.0
    %v107 = vadd.f32 %v73, 1.0
    %v108 = vrcp.pop %v106
    %v109 = vrcp.pop %v107
    %v110 = vmul.f32 %v103, %v108
    %v111 = vmul.f32 %v105, %v109
    %v112 = vsub.f32 1.0, %v110
    %v113 = vsub.f32 1.0, %v111
    %v114 = vmul.f32 %v112, %v112
    %v115 = vmul.f32 %v113, %v113
    %v116 = vmul.f32 %v114, %v98
    %v117 = vmul.f32 %v115, %v99
    %v118 = vsel %vm64, %v116, 0.0
    %v119 = vsel %vm65, %v117, 0.0
    %v120 = vsel %vm64, 1, 0
    %v121 = vsel %vm65, 1, 0
    %v122 = vcvt.s32.f32 %v120
    %v123 = vcvt.s32.f32 %v121
    %v124 = vadd.f32 %v118, %v119
    %125 = vst [vmem:[#allocation7] sm:$0xff] %v124
    %v126 = vadd.f32 %v122, %v123
    %127 = vst [vmem:[#allocation8] sm:$0xff] %v126
    // Predicated region
    $region18: #{tpu_custom_call.1} parent=1 // pred_check
      _
    $region19: #{tpu_custom_call.1} parent=1 // pred_check_branch
      %129 = sbr.rel (0) target = $region21
    $region20: #{tpu_custom_call.1} parent=1 // pred_region
      %s131 = ssub.s32 128, 128
      %132 = vsyncadd [#allocation4], %s131
      %s134 = sshll.u32 [#allocation7], 4
      %s135 = int_to_ptr.vmem [resolvable:$true] %s134
      %137 = dma.vmem_to_hbm [thread:$0]  %s135, 128, %s2, [#allocation4]
    $region21: #{tpu_custom_call.1} parent=1 // pred_fallthru
      _
    // Predicated region
    $region22: #{tpu_custom_call.1} parent=1 // pred_check
      _
    $region23: #{tpu_custom_call.1} parent=1 // pred_check_branch
      %139 = sbr.rel (0) target = $region25
    $region24: #{tpu_custom_call.1} parent=1 // pred_region
      %s141 = ssub.s32 128, 128
      %142 = vsyncadd [#allocation9], %s141
      %s144 = sshll.u32 [#allocation8], 4
      %s145 = int_to_ptr.vmem [resolvable:$true] %s144
      %147 = dma.vmem_to_hbm [thread:$0]  %s145, 128, %s3, [#allocation9]
    $region25: #{tpu_custom_call.1} parent=1 // pred_fallthru
      _
    // Predicated region
    $region26: #{tpu_custom_call.1} parent=1 // pred_check
      _
    $region27: #{tpu_custom_call.1} parent=1 // pred_check_branch
      %149 = sbr.rel (0) target = $region29
    $region28: #{tpu_custom_call.1} parent=1 // pred_region
      %150 = dma.done [#allocation4], 128
    $region29: #{tpu_custom_call.1} parent=1 // pred_fallthru
      _
    // Predicated region
    $region30: #{tpu_custom_call.1} parent=1 // pred_check
      _
    $region31: #{tpu_custom_call.1} parent=1 // pred_check_branch
      %152 = sbr.rel (0) target = $region33
    $region32: #{tpu_custom_call.1} parent=1 // pred_region
      %153 = dma.done [#allocation9], 128
    $region33: #{tpu_custom_call.1} parent=1 // pred_fallthru
      _
    %154 = vsyncpa [#allocation3], 1
    %155 = vsyncpa [#allocation6], 1
    %156 = vsyncpa [#allocation4], 1
    %157 = vsyncpa [#allocation9], 1

</llo_original>
